<compile_context>
chip_gen: v7x
topology: tpu7x:2x2x1
jax: 0.10.0
libtpu: 0.0.40
codegen_flags: <defaults>
</compile_context>

<pallas_src>
import functools

import jax
import jax.numpy as jnp
from jax.experimental import pallas as pl
from jax.experimental.pallas import tpu as pltpu

LANE = 128
SUBLANE = 8
CHUNK = SUBLANE * LANE  # 1024 elements: smallest unit the kernel consumes


def _bce_kernel(yt_ref, yp_ref, w_ref, out_ref, loss_acc, w_acc, *,
                rows, tile_rows, steps_per_shard):
    s = pl.program_id(0)   # shard (TensorCore) axis -- "parallel"
    j = pl.program_id(1)   # reduction axis within the shard -- "arbitrary"

    @pl.when(j == 0)
    def _():
        loss_acc[...] = jnp.zeros_like(loss_acc)
        w_acc[...] = jnp.zeros_like(w_acc)

    eps = jnp.float32(1e-07)
    one = jnp.float32(1.0)

    yt = yt_ref[...].astype(jnp.float32)
    w = w_ref[...].astype(jnp.float32)
    # Clamp BEFORE the logs: keeps them finite even on unspecified edge-block rows.
    yp = (one - jnp.float32(2.0) * eps) * yp_ref[...].astype(jnp.float32) + eps
    bce = (-yt * jnp.log(yp) - (one - yt) * jnp.log(one - yp)) * w

    step = s * steps_per_shard + j            # logical (unclamped) step index
    is_edge = (step + 1) * tile_rows > rows   # partial last tile or clamped OOR step

    def fold(x):
        # (tile_rows, 128) -> (8, 128): pure VPU adds, no cross-lane (XLU) work.
        return jnp.sum(x.reshape(tile_rows // SUBLANE, SUBLANE, LANE), axis=0)

    @pl.when(jnp.logical_not(is_edge))
    def _():  # interior full tiles: no mask arithmetic at all
        loss_acc[...] += fold(bce)
        w_acc[...] += fold(w)

    @pl.when(is_edge)
    def _():  # partial last tile and clamped out-of-range steps of an uneven shard
        row_idx = step * tile_rows + jax.lax.broadcasted_iota(
            jnp.int32, (tile_rows, LANE), 0)
        valid = row_idx < rows
        # jnp.where select: garbage/NaN from unspecified edge rows never reaches acc.
        loss_acc[...] += fold(jnp.where(valid, bce, jnp.float32(0.0)))
        w_acc[...] += fold(jnp.where(valid, w, jnp.float32(0.0)))

    @pl.when(j == pl.num_programs(1) - 1)
    def _():  # one cross-lane reduce + SMEM scalar store per shard
        out_ref[0, 0] = jnp.sum(loss_acc[...])
        out_ref[0, 1] = jnp.sum(w_acc[...])


def _bce_terms(y_true, y_pred, weight):
    """Plain-jnp (loss_sum, weight_sum) for the tiny (<1024 elems) ragged tail."""
    eps = jnp.float32(1e-07)
    yt = y_true.astype(jnp.float32)
    w = weight.astype(jnp.float32)
    yp = (jnp.float32(1.0) - jnp.float32(2.0) * eps) * y_pred.astype(jnp.float32) + eps
    bce = (-yt * jnp.log(yp) - (jnp.float32(1.0) - yt) * jnp.log(jnp.float32(1.0) - yp)) * w
    return jnp.sum(bce), jnp.sum(w)


def _default_num_shards():
    # 2 shards only helps on megacore parts (v7x: 2 TCs/chip); v5e/v6e -> 1 shard.
    try:
        info = pltpu.get_tpu_info()
        for attr in ("num_cores", "num_tensorcores", "tensorcores_per_chip",
                     "cores_per_chip"):
            v = getattr(info, attr, None)
            if isinstance(v, int) and v > 0:
                return v
    except Exception:
        pass
    return 1


@functools.partial(jax.jit, static_argnames=("max_tile_rows", "num_shards"))
def bce_loss(y_true, y_pred, weight, *, max_tile_rows=4096, num_shards=None):
    """Weighted BCE mean: sum(bce * w) / sum(w). Returns an f32 scalar."""
    n = y_true.size
    if num_shards is None:
        num_shards = _default_num_shards()

    # Kernel consumes the largest prefix that forms whole (8, 128) chunks.
    rows = (n // CHUNK) * SUBLANE            # multiple of 8
    n_main = rows * LANE

    yt_f = jnp.reshape(y_true, (-1,))
    yp_f = jnp.reshape(y_pred, (-1,))
    w_f = jnp.reshape(weight, (-1,))

    if n_main < n:                           # ragged tail: no pad copy, plain jnp
        tail_loss, tail_w = _bce_terms(yt_f[n_main:], yp_f[n_main:], w_f[n_main:])
    else:
        tail_loss = jnp.float32(0.0)
        tail_w = jnp.float32(0.0)

    if rows == 0:                            # tiny input: nothing for the kernel
        return tail_loss / tail_w

    # Keep tile_rows a multiple of SUBLANE and never larger than the array.
    max_tile_rows = max(SUBLANE, (int(max_tile_rows) // SUBLANE) * SUBLANE)
    tile_rows = min(max_tile_rows, rows)
    steps_total = pl.cdiv(rows, tile_rows)
    num_shards = max(1, min(int(num_shards), steps_total))
    steps_per_shard = pl.cdiv(steps_total, num_shards)

    def to2d(x):
        return jnp.reshape(x[:n_main], (rows, LANE))   # contiguous: no copy

    yt2, yp2, w2 = to2d(yt_f), to2d(yp_f), to2d(w_f)

    def in_map(s, j):
        step = s * steps_per_shard + j
        # Clamp fully-out-of-range steps onto the last tile (zeroed in-kernel).
        return (jnp.minimum(step, steps_total - 1), 0)

    kernel = functools.partial(_bce_kernel, rows=rows, tile_rows=tile_rows,
                               steps_per_shard=steps_per_shard)

    in_spec = pl.BlockSpec((tile_rows, LANE), in_map)
    in_bytes = (y_true.dtype.itemsize + y_pred.dtype.itemsize
                + weight.dtype.itemsize) * n_main

    partials = pl.pallas_call(
        kernel,
        out_shape=jax.ShapeDtypeStruct((num_shards, 2), jnp.float32),
        grid_spec=pltpu.PrefetchScalarGridSpec(
            num_scalar_prefetch=0,
            grid=(num_shards, steps_per_shard),
            in_specs=[in_spec, in_spec, in_spec],
            out_specs=pl.BlockSpec((1, 2), lambda s, j: (s, 0),
                                   memory_space=pltpu.MemorySpace.SMEM),
            scratch_shapes=[
                pltpu.VMEM((SUBLANE, LANE), jnp.float32),  # loss partial sums
                pltpu.VMEM((SUBLANE, LANE), jnp.float32),  # weight partial sums
            ],
        ),
        compiler_params=pltpu.CompilerParams(
            dimension_semantics=("parallel", "arbitrary"),
            vmem_limit_bytes=48 << 20),
        cost_estimate=pl.CostEstimate(
            flops=10 * n_main, transcendentals=2 * n_main,
            bytes_accessed=in_bytes + 8 * num_shards),
    )(yt2, yp2, w2)

    total_loss = jnp.sum(partials[:, 0]) + tail_loss
    total_w = jnp.sum(partials[:, 1]) + tail_w
    return total_loss / total_w


def _reference(y_true, y_pred, weight):
    eps = 1e-07
    yp = (1.0 - 2.0 * eps) * y_pred + eps
    total = jnp.sum((-y_true * jnp.log(yp) - (1.0 - y_true) * jnp.log(1.0 - yp)) * weight)
    return total / jnp.sum(weight)


def _make_inputs(key, shape):
    k1, k2, k3 = jax.random.split(key, 3)
    y_true = jnp.round(jax.random.uniform(k1, shape, dtype=jnp.float32))      # {0,1}
    y_pred = jax.nn.sigmoid(jax.random.normal(k2, shape, dtype=jnp.float32))  # probs
    weight = jax.random.uniform(k3, shape, dtype=jnp.float32) + 0.1           # > 0
    return y_true, y_pred, weight


if __name__ == "__main__":
    key = jax.random.PRNGKey(0)

    # 1) Main case: NCHW, numel % 1024 == 0 -> single full tile, unmasked path only.
    yt, yp, w = _make_inputs(key, (2, 4, 16, 16))
    loss = bce_loss(yt, yp, w)
    jax.block_until_ready(loss)
    ref = _reference(yt, yp, w)
    assert jnp.allclose(loss, ref, rtol=1e-5, atol=1e-5), (loss, ref)

    # 2) Ragged case: numel % 1024 != 0 -> kernel prefix + plain-jnp tail combine.
    yt2, yp2, w2 = _make_inputs(jax.random.PRNGKey(1), (3, 5, 7, 11))
    loss2 = bce_loss(yt2, yp2, w2)
    jax.block_until_ready(loss2)
    ref2 = _reference(yt2, yp2, w2)
    assert jnp.allclose(loss2, ref2, rtol=1e-5, atol=1e-5), (loss2, ref2)

    # 3) Multi-step, two-shard, uneven split: 3 steps over 2 shards exercises the
    #    clamped, fully-masked out-of-range step and the per-shard init/finalize.
    yt3, yp3, w3 = _make_inputs(jax.random.PRNGKey(2), (3, 8, 128))
    loss3 = bce_loss(yt3, yp3, w3, max_tile_rows=8, num_shards=2)
    jax.block_until_ready(loss3)
    ref3 = _reference(yt3, yp3, w3)
    assert jnp.allclose(loss3, ref3, rtol=1e-5, atol=1e-5), (loss3, ref3)

    # 4) Partial last tile within a single shard (rows=24, tile_rows=16): exercises
    #    the pl.when-gated mask path on the edge block.
    loss4 = bce_loss(yt3, yp3, w3, max_tile_rows=16, num_shards=1)
    jax.block_until_ready(loss4)
    assert jnp.allclose(loss4, ref3, rtol=1e-5, atol=1e-5), (loss4, ref3)

    print("KERNEL_OK")
</pallas_src>

<mosaic_0001>
module attributes {stable_mosaic.version = 11 : i64} {
  func.func @_bce_kernel(%arg0: i32, %arg1: i32, %arg2: memref<16x128xf32, #tpu.memory_space<vmem>>, %arg3: memref<16x128xf32, #tpu.memory_space<vmem>>, %arg4: memref<16x128xf32, #tpu.memory_space<vmem>>, %arg5: memref<1x2xf32, #tpu.memory_space<smem>>, %arg6: memref<8x128xf32, #tpu.memory_space<vmem>>, %arg7: memref<8x128xf32, #tpu.memory_space<vmem>>) attributes {dimension_semantics = [#tpu.dimension_semantics<parallel>, #tpu.dimension_semantics<arbitrary>], iteration_bounds = array<i64: 1, 1>, scalar_prefetch = 0 : i64, scratch_operands = 2 : i64, tpu.core_type = #tpu.core_type<tc>, window_params = [{transform_indices = @transform_0, window_bounds = array<i64: 16, 128>}, {transform_indices = @transform_1, window_bounds = array<i64: 16, 128>}, {transform_indices = @transform_2, window_bounds = array<i64: 16, 128>}, {transform_indices = @transform_3, window_bounds = array<i64: 1, 2>}]} {
    %c0_i32 = arith.constant 0 : i32
    %0 = arith.cmpi eq, %arg1, %c0_i32 : i32
    %1 = arith.extui %0 : i1 to i32
    %c0_i32_0 = arith.constant 0 : i32
    %2 = arith.cmpi ne, %1, %c0_i32_0 : i32
    scf.if %2 {
      %cst_18 = arith.constant 0.000000e+00 : f32
      %37 = vector.broadcast %cst_18 : f32 to vector<8x128xf32>
      %c0_19 = arith.constant 0 : index
      %c0_20 = arith.constant 0 : index
      %38 = vector.load %arg6[%c0_19, %c0_20] : memref<8x128xf32, #tpu.memory_space<vmem>>, vector<8x128xf32>
      tpu.vector_store %arg6[%c0_19, %c0_20], %37 {strides = array<i32>} : memref<8x128xf32, #tpu.memory_space<vmem>>, vector<8x128xf32>,
      %cst_21 = arith.constant 0.000000e+00 : f32
      %39 = vector.broadcast %cst_21 : f32 to vector<8x128xf32>
      %c0_22 = arith.constant 0 : index
      %c0_23 = arith.constant 0 : index
      %40 = vector.load %arg7[%c0_22, %c0_23] : memref<8x128xf32, #tpu.memory_space<vmem>>, vector<8x128xf32>
      tpu.vector_store %arg7[%c0_22, %c0_23], %39 {strides = array<i32>} : memref<8x128xf32, #tpu.memory_space<vmem>>, vector<8x128xf32>,
    } else {
    }
    %c0 = arith.constant 0 : index
    %c0_1 = arith.constant 0 : index
    %3 = vector.load %arg2[%c0, %c0_1] : memref<16x128xf32, #tpu.memory_space<vmem>>, vector<16x128xf32>
    %c0_2 = arith.constant 0 : index
    %c0_3 = arith.constant 0 : index
    %4 = vector.load %arg4[%c0_2, %c0_3] : memref<16x128xf32, #tpu.memory_space<vmem>>, vector<16x128xf32>
    %cst = arith.constant 2.000000e+00 : f32
    %cst_4 = arith.constant 1.000000e-07 : f32
    %5 = arith.mulf %cst, %cst_4 : f32
    %cst_5 = arith.constant 1.000000e+00 : f32
    %6 = arith.subf %cst_5, %5 : f32
    %c0_6 = arith.constant 0 : index
    %c0_7 = arith.constant 0 : index
    %7 = vector.load %arg3[%c0_6, %c0_7] : memref<16x128xf32, #tpu.memory_space<vmem>>, vector<16x128xf32>
    %8 = vector.broadcast %6 : f32 to vector<16x128xf32>
    %9 = arith.mulf %8, %7 : vector<16x128xf32>
    %cst_8 = arith.constant 1.000000e-07 : f32
    %10 = vector.broadcast %cst_8 : f32 to vector<16x128xf32>
    %11 = arith.addf %9, %10 : vector<16x128xf32>
    %cst_9 = arith.constant 0.000000e+00 : f32
    %12 = vector.broadcast %cst_9 : f32 to vector<16x128xf32>
    %13 = arith.subf %12, %3 : vector<16x128xf32>
    %14 = math.log %11 : vector<16x128xf32>
    %15 = arith.mulf %13, %14 : vector<16x128xf32>
    %cst_10 = arith.constant 1.000000e+00 : f32
    %16 = vector.broadcast %cst_10 : f32 to vector<16x128xf32>
    %17 = arith.subf %16, %3 : vector<16x128xf32>
    %cst_11 = arith.constant 1.000000e+00 : f32
    %18 = vector.broadcast %cst_11 : f32 to vector<16x128xf32>
    %19 = arith.subf %18, %11 : vector<16x128xf32>
    %20 = math.log %19 : vector<16x128xf32>
    %21 = arith.mulf %17, %20 : vector<16x128xf32>
    %22 = arith.subf %15, %21 : vector<16x128xf32>
    %23 = arith.mulf %22, %4 : vector<16x128xf32>
    %c1_i32 = arith.constant 1 : i32
    %24 = arith.muli %arg0, %c1_i32 : i32
    %25 = arith.addi %24, %arg1 : i32
    %c1_i32_12 = arith.constant 1 : i32
    %26 = arith.addi %25, %c1_i32_12 : i32
    %c16_i32 = arith.constant 16 : i32
    %27 = arith.muli %26, %c16_i32 : i32
    %c16_i32_13 = arith.constant 16 : i32
    %28 = arith.cmpi sgt, %27, %c16_i32_13 : i32
    %true = arith.constant true
    %29 = arith.xori %28, %true : i1
    %30 = arith.extui %29 : i1 to i32
    %c0_i32_14 = arith.constant 0 : i32
    %31 = arith.cmpi ne, %30, %c0_i32_14 : i32
    scf.if %31 {
      %c0_18 = arith.constant 0 : index
      %c0_19 = arith.constant 0 : index
      %37 = vector.load %arg6[%c0_18, %c0_19] : memref<8x128xf32, #tpu.memory_space<vmem>>, vector<8x128xf32>
      %38 = vector.shape_cast %23 : vector<16x128xf32> to vector<2x8x128xf32>
      %cst_20 = arith.constant dense<0.000000e+00> : vector<8x128xf32>
      %39 = vector.multi_reduction <add>, %38, %cst_20 [0] : vector<2x8x128xf32> to vector<8x128xf32>
      %40 = arith.addf %37, %39 : vector<8x128xf32>
      %c0_21 = arith.constant 0 : index
      %c0_22 = arith.constant 0 : index
      %41 = vector.load %arg6[%c0_21, %c0_22] : memref<8x128xf32, #tpu.memory_space<vmem>>, vector<8x128xf32>
      tpu.vector_store %arg6[%c0_21, %c0_22], %40 {strides = array<i32>} : memref<8x128xf32, #tpu.memory_space<vmem>>, vector<8x128xf32>,
      %c0_23 = arith.constant 0 : index
      %c0_24 = arith.constant 0 : index
      %42 = vector.load %arg7[%c0_23, %c0_24] : memref<8x128xf32, #tpu.memory_space<vmem>>, vector<8x128xf32>
      %43 = vector.shape_cast %4 : vector<16x128xf32> to vector<2x8x128xf32>
      %cst_25 = arith.constant dense<0.000000e+00> : vector<8x128xf32>
      %44 = vector.multi_reduction <add>, %43, %cst_25 [0] : vector<2x8x128xf32> to vector<8x128xf32>
      %45 = arith.addf %42, %44 : vector<8x128xf32>
      %c0_26 = arith.constant 0 : index
      %c0_27 = arith.constant 0 : index
      %46 = vector.load %arg7[%c0_26, %c0_27] : memref<8x128xf32, #tpu.memory_space<vmem>>, vector<8x128xf32>
      tpu.vector_store %arg7[%c0_26, %c0_27], %45 {strides = array<i32>} : memref<8x128xf32, #tpu.memory_space<vmem>>, vector<8x128xf32>,
    } else {
    }
    %32 = arith.extui %28 : i1 to i32
    %c0_i32_15 = arith.constant 0 : i32
    %33 = arith.cmpi ne, %32, %c0_i32_15 : i32
    scf.if %33 {
      %c16_i32_18 = arith.constant 16 : i32
      %37 = arith.muli %25, %c16_i32_18 : i32
      %38 = tpu.iota {dimensions = array<i32: 0>} : vector<16x128xi32>
      %39 = vector.broadcast %37 : i32 to vector<16x128xi32>
      %40 = arith.addi %39, %38 : vector<16x128xi32>
      %c16_i32_19 = arith.constant 16 : i32
      %41 = vector.broadcast %c16_i32_19 : i32 to vector<16x128xi32>
      %42 = arith.cmpi slt, %40, %41 : vector<16x128xi32>
      %c0_20 = arith.constant 0 : index
      %c0_21 = arith.constant 0 : index
      %43 = vector.load %arg6[%c0_20, %c0_21] : memref<8x128xf32, #tpu.memory_space<vmem>>, vector<8x128xf32>
      %cst_22 = arith.constant 0.000000e+00 : f32
      %44 = vector.broadcast %cst_22 : f32 to vector<16x128xf32>
      %45 = arith.select %42, %23, %44 : vector<16x128xi1>, vector<16x128xf32>
      %46 = vector.shape_cast %45 : vector<16x128xf32> to vector<2x8x128xf32>
      %cst_23 = arith.constant dense<0.000000e+00> : vector<8x128xf32>
      %47 = vector.multi_reduction <add>, %46, %cst_23 [0] : vector<2x8x128xf32> to vector<8x128xf32>
      %48 = arith.addf %43, %47 : vector<8x128xf32>
      %c0_24 = arith.constant 0 : index
      %c0_25 = arith.constant 0 : index
      %49 = vector.load %arg6[%c0_24, %c0_25] : memref<8x128xf32, #tpu.memory_space<vmem>>, vector<8x128xf32>
      tpu.vector_store %arg6[%c0_24, %c0_25], %48 {strides = array<i32>} : memref<8x128xf32, #tpu.memory_space<vmem>>, vector<8x128xf32>,
      %c0_26 = arith.constant 0 : index
      %c0_27 = arith.constant 0 : index
      %50 = vector.load %arg7[%c0_26, %c0_27] : memref<8x128xf32, #tpu.memory_space<vmem>>, vector<8x128xf32>
      %cst_28 = arith.constant 0.000000e+00 : f32
      %51 = vector.broadcast %cst_28 : f32 to vector<16x128xf32>
      %52 = arith.select %42, %4, %51 : vector<16x128xi1>, vector<16x128xf32>
      %53 = vector.shape_cast %52 : vector<16x128xf32> to vector<2x8x128xf32>
      %cst_29 = arith.constant dense<0.000000e+00> : vector<8x128xf32>
      %54 = vector.multi_reduction <add>, %53, %cst_29 [0] : vector<2x8x128xf32> to vector<8x128xf32>
      %55 = arith.addf %50, %54 : vector<8x128xf32>
      %c0_30 = arith.constant 0 : index
      %c0_31 = arith.constant 0 : index
      %56 = vector.load %arg7[%c0_30, %c0_31] : memref<8x128xf32, #tpu.memory_space<vmem>>, vector<8x128xf32>
      tpu.vector_store %arg7[%c0_30, %c0_31], %55 {strides = array<i32>} : memref<8x128xf32, #tpu.memory_space<vmem>>, vector<8x128xf32>,
    } else {
    }
    %c0_i32_16 = arith.constant 0 : i32
    %34 = arith.cmpi eq, %arg1, %c0_i32_16 : i32
    %35 = arith.extui %34 : i1 to i32
    %c0_i32_17 = arith.constant 0 : i32
    %36 = arith.cmpi ne, %35, %c0_i32_17 : i32
    scf.if %36 {
      %c0_18 = arith.constant 0 : index
      %c0_19 = arith.constant 0 : index
      %37 = vector.load %arg6[%c0_18, %c0_19] : memref<8x128xf32, #tpu.memory_space<vmem>>, vector<8x128xf32>
      %38 = vector.shape_cast %37 : vector<8x128xf32> to vector<1x8x128xf32>
      %cst_20 = arith.constant dense<0.000000e+00> : vector<1xf32>
      %39 = vector.multi_reduction <add>, %38, %cst_20 [1, 2] : vector<1x8x128xf32> to vector<1xf32>
      %40 = vector.shape_cast %39 : vector<1xf32> to vector<1x1x1xf32>
      %41 = vector.extract %40[0, 0, 0] : f32 from vector<1x1x1xf32>
      %c0_21 = arith.constant 0 : index
      %c0_22 = arith.constant 0 : index
      %42 = memref.load %arg5[%c0_21, %c0_22] : memref<1x2xf32, #tpu.memory_space<smem>>
      memref.store %41, %arg5[%c0_21, %c0_22] : memref<1x2xf32, #tpu.memory_space<smem>>
      %c0_23 = arith.constant 0 : index
      %c0_24 = arith.constant 0 : index
      %43 = vector.load %arg7[%c0_23, %c0_24] : memref<8x128xf32, #tpu.memory_space<vmem>>, vector<8x128xf32>
      %44 = vector.shape_cast %43 : vector<8x128xf32> to vector<1x8x128xf32>
      %cst_25 = arith.constant dense<0.000000e+00> : vector<1xf32>
      %45 = vector.multi_reduction <add>, %44, %cst_25 [1, 2] : vector<1x8x128xf32> to vector<1xf32>
      %46 = vector.shape_cast %45 : vector<1xf32> to vector<1x1x1xf32>
      %47 = vector.extract %46[0, 0, 0] : f32 from vector<1x1x1xf32>
      %c0_26 = arith.constant 0 : index
      %c1 = arith.constant 1 : index
      %48 = memref.load %arg5[%c0_26, %c1] : memref<1x2xf32, #tpu.memory_space<smem>>
      memref.store %47, %arg5[%c0_26, %c1] : memref<1x2xf32, #tpu.memory_space<smem>>
    } else {
    }
    return
  }
  func.func @transform_0(%arg0: i32, %arg1: i32) -> (i32, i32) {
    %c1_i32 = arith.constant 1 : i32
    %0 = arith.muli %arg0, %c1_i32 : i32
    %1 = arith.addi %0, %arg1 : i32
    %c0_i32 = arith.constant 0 : i32
    %2 = arith.minsi %1, %c0_i32 : i32
    %c0_i32_0 = arith.constant 0 : i32
    %c0_i32_1 = arith.constant 0 : i32
    return %2, %c0_i32_0 : i32, i32
  }
  func.func @transform_1(%arg0: i32, %arg1: i32) -> (i32, i32) {
    %c1_i32 = arith.constant 1 : i32
    %0 = arith.muli %arg0, %c1_i32 : i32
    %1 = arith.addi %0, %arg1 : i32
    %c0_i32 = arith.constant 0 : i32
    %2 = arith.minsi %1, %c0_i32 : i32
    %c0_i32_0 = arith.constant 0 : i32
    %c0_i32_1 = arith.constant 0 : i32
    return %2, %c0_i32_0 : i32, i32
  }
  func.func @transform_2(%arg0: i32, %arg1: i32) -> (i32, i32) {
    %c1_i32 = arith.constant 1 : i32
    %0 = arith.muli %arg0, %c1_i32 : i32
    %1 = arith.addi %0, %arg1 : i32
    %c0_i32 = arith.constant 0 : i32
    %2 = arith.minsi %1, %c0_i32 : i32
    %c0_i32_0 = arith.constant 0 : i32
    %c0_i32_1 = arith.constant 0 : i32
    return %2, %c0_i32_0 : i32, i32
  }
  func.func @transform_3(%arg0: i32, %arg1: i32) -> (i32, i32) {
    %c0_i32 = arith.constant 0 : i32
    %c0_i32_0 = arith.constant 0 : i32
    return %arg0, %c0_i32 : i32, i32
  }
}

</mosaic_0001>

<llo_original>
// kernel: bce_loss.1
$region0: #{bce_loss.1}
  #allocation0 [shape = 'u32[]', space=smem, size = 0x4, offset = 0x4, fixed_abs, tag = 'smem constant byte address 0x4 - core index']
  #allocation1 [shape = 'u32[144,128]{1,0:T(1,128)}', space=vmem, size = 0x12000, scoped, tag = 'internal scratch']
  #allocation2 [shape = 'f32[8,128]{1,0:T(8,128)}', space=vmem, size = 0x1000, scoped, tag = 'scratch operand']
  #allocation3 [shape = 'f32[8,128]{1,0:T(8,128)}', space=vmem, size = 0x1000, scoped, tag = 'scratch operand']
  %s0 = inlined_call_operand.vmem [shape: f32[16,128], index: 0, kind: input, shape index: {}]
  %s1 = inlined_call_operand.vmem [shape: f32[16,128], index: 1, kind: input, shape index: {}]
  %s2 = inlined_call_operand.vmem [shape: f32[16,128], index: 2, kind: input, shape index: {}]
  %s3 = inlined_call_operand.vmem [shape: f32[1,2], index: 3, kind: output, shape index: {}]
  %s4 = sld [smem:[#allocation0]]
  $region38: #{bce_loss.1} parent=0
    _
  %s6 = ssub.s32 1, %s4
  %s7 = scalar_select 0, %s6, %s4
  $region1: #{bce_loss.1} parent=0
    #allocation4 [shape = 'u8[512]{0}', space=smem, size = 0x200, scoped, tag = 'output window, operand 0, single buffered']
    #allocation5 [shape = 's32[1]{0}', space=sflag, size = 0x4, scoped, tag = 'scoped memory for bce_loss.1']
    %8 = vsyncpa [#allocation5], 0
    // Predicated region
    $region2: #{bce_loss.1} parent=1 // pred_check
      _
    $region3: #{bce_loss.1} parent=1 // pred_check_branch
      %10 = sbr.rel (0) target = $region5
    $region4: #{bce_loss.1} parent=1 // pred_region
      %s11 = sadd.s32 0, 0
      %p12 = scmp.lt.s32.totalorder %s11, 0
      %s13 = scalar_select %p12, %s11, 0
      %s14 = smul.u32 2, %s13
      %p15 = scmp.lt.s32.totalorder %s14, 1
      %s16 = scalar_select %p15, %s14, 1
      %s17 = smul.addr %s16, 8
      %s18 = scalar_lea.vmem %s0, %s17
      %s19 = sadd.s32 0, 0
      %p20 = scmp.lt.s32.totalorder %s19, 0
      %s21 = scalar_select %p20, %s19, 0
      %s22 = smul.u32 2, %s21
    $region5: #{bce_loss.1} parent=1 // pred_fallthru
      _
    // Predicated region
    $region6: #{bce_loss.1} parent=1 // pred_check
      _
    $region7: #{bce_loss.1} parent=1 // pred_check_branch
      %24 = sbr.rel (0) target = $region9
    $region8: #{bce_loss.1} parent=1 // pred_region
      %s25 = sadd.s32 0, 0
      %p26 = scmp.lt.s32.totalorder %s25, 0
      %s27 = scalar_select %p26, %s25, 0
      %s28 = smul.u32 2, %s27
      %p29 = scmp.lt.s32.totalorder %s28, 1
      %s30 = scalar_select %p29, %s28, 1
      %s31 = smul.addr %s30, 8
      %s32 = scalar_lea.vmem %s1, %s31
      %s33 = sadd.s32 0, 0
      %p34 = scmp.lt.s32.totalorder %s33, 0
      %s35 = scalar_select %p34, %s33, 0
      %s36 = smul.u32 2, %s35
    $region9: #{bce_loss.1} parent=1 // pred_fallthru
      _
    // Predicated region
    $region10: #{bce_loss.1} parent=1 // pred_check
      _
    $region11: #{bce_loss.1} parent=1 // pred_check_branch
      %38 = sbr.rel (0) target = $region13
    $region12: #{bce_loss.1} parent=1 // pred_region
      %s39 = sadd.s32 0, 0
      %p40 = scmp.lt.s32.totalorder %s39, 0
      %s41 = scalar_select %p40, %s39, 0
      %s42 = smul.u32 2, %s41
      %p43 = scmp.lt.s32.totalorder %s42, 1
      %s44 = scalar_select %p43, %s42, 1
      %s45 = smul.addr %s44, 8
      %s46 = scalar_lea.vmem %s2, %s45
      %s47 = sadd.s32 0, 0
      %p48 = scmp.lt.s32.totalorder %s47, 0
      %s49 = scalar_select %p48, %s47, 0
      %s50 = smul.u32 2, %s49
    $region13: #{bce_loss.1} parent=1 // pred_fallthru
      _
    %s51 = sadd.s32 0, 0
    %p52 = scmp.lt.s32.totalorder %s51, 0
    %s53 = scalar_select %p52, %s51, 0
    %s54 = smul.u32 2, %s53
    %p55 = scmp.lt.s32.totalorder %s54, 1
    %s56 = scalar_select %p55, %s54, 1
    %s57 = smul.addr %s56, 8
    %s58 = scalar_lea.vmem %s0, %s57
    %s59 = sadd.s32 0, 0
    %p60 = scmp.lt.s32.totalorder %s59, 0
    %s61 = scalar_select %p60, %s59, 0
    %s62 = smul.u32 2, %s61
    %p63 = scmp.lt.s32.totalorder %s62, 1
    %s64 = scalar_select %p63, %s62, 1
    %s65 = smul.addr %s64, 8
    %s66 = scalar_lea.vmem %s1, %s65
    %s67 = sadd.s32 0, 0
    %p68 = scmp.lt.s32.totalorder %s67, 0
    %s69 = scalar_select %p68, %s67, 0
    %s70 = smul.u32 2, %s69
    %p71 = scmp.lt.s32.totalorder %s70, 1
    %s72 = scalar_select %p71, %s70, 1
    %s73 = smul.addr %s72, 8
    %s74 = scalar_lea.vmem %s2, %s73
    %s75 = sadd.s32 0, 0
    %p76 = scmp.lt.s32.totalorder %s75, 0
    %s77 = scalar_select %p76, %s75, 0
    %s78 = smul.u32 2, %s77
    %p79 = scmp.lt.s32.totalorder %s78, 1
    %s80 = scalar_select %p79, %s78, 1
    %s81 = smul.addr %s80, 8
    %s82 = scalar_lea.vmem %s0, %s81
    %s83 = sadd.s32 0, 0
    %p84 = scmp.lt.s32.totalorder %s83, 0
    %s85 = scalar_select %p84, %s83, 0
    %s86 = smul.u32 2, %s85
    %s87 = sadd.s32 0, 0
    %p88 = scmp.lt.s32.totalorder %s87, 0
    %s89 = scalar_select %p88, %s87, 0
    %s90 = smul.u32 2, %s89
    %p91 = scmp.lt.s32.totalorder %s90, 1
    %s92 = scalar_select %p91, %s90, 1
    %s93 = smul.addr %s92, 8
    %s94 = scalar_lea.vmem %s1, %s93
    %s95 = sadd.s32 0, 0
    %p96 = scmp.lt.s32.totalorder %s95, 0
    %s97 = scalar_select %p96, %s95, 0
    %s98 = smul.u32 2, %s97
    %s99 = sadd.s32 0, 0
    %p100 = scmp.lt.s32.totalorder %s99, 0
    %s101 = scalar_select %p100, %s99, 0
    %s102 = smul.u32 2, %s101
    %p103 = scmp.lt.s32.totalorder %s102, 1
    %s104 = scalar_select %p103, %s102, 1
    %s105 = smul.addr %s104, 8
    %s106 = scalar_lea.vmem %s2, %s105
    %s107 = sadd.s32 0, 0
    %p108 = scmp.lt.s32.totalorder %s107, 0
    %s109 = scalar_select %p108, %s107, 0
    %s110 = smul.u32 2, %s109
    %p111 = scmp.eq.s32.totalorder 0, 0
    // Predicated region
    $region14: #{bce_loss.1} parent=1 // pred_check
      %p112 = pneg %p111
    $region15: #{bce_loss.1} parent=1 // pred_check_branch
      %114 = sbr.rel (%p112) target = $region17
    $region16: #{bce_loss.1} parent=1 // pred_region
      %115 = vst [vmem:[#allocation2] sm:$0xff] 0.0
      %116 = vst [vmem:[#allocation3] sm:$0xff] 0.0
    $region17: #{bce_loss.1} parent=1 // pred_fallthru
      _
    %v117 = vld [vmem:[%s82] sm:$0xff]
    %v118 = vld [vmem:[%s82 + $0x8] sm:$0xff]
    %v119 = vld [vmem:[%s106] sm:$0xff]
    %v120 = vld [vmem:[%s106 + $0x8] sm:$0xff]
    %v121 = vld [vmem:[%s94] sm:$0xff]
    %v122 = vld [vmem:[%s94 + $0x8] sm:$0xff]
    %v123 = vmul.f32 %v121, 0.9999998
    %v124 = vmul.f32 %v122, 0.9999998
    %v125 = vadd.f32 %v123, 1e-07
    %v126 = vadd.f32 %v124, 1e-07
    %v127 = vsub.f32 0.0, %v117
    %v128 = vsub.f32 0.0, %v118
    %v129 = vlog2.pop %v125
    %v130 = vmul.f32 %v129, 0.6931472
    %v131 = vlog2.pop %v126
    %v132 = vmul.f32 %v131, 0.6931472
    %v133 = vmul.f32 %v127, %v130
    %v134 = vmul.f32 %v128, %v132
    %v135 = vsub.f32 1.0, %v117
    %v136 = vsub.f32 1.0, %v118
    %v137 = vsub.f32 1.0, %v125
    %v138 = vsub.f32 1.0, %v126
    %v139 = vlog2.pop %v137
    %v140 = vmul.f32 %v139, 0.6931472
    %v141 = vlog2.pop %v138
    %v142 = vmul.f32 %v141, 0.6931472
    %v143 = vmul.f32 %v135, %v140
    %v144 = vmul.f32 %v136, %v142
    %v145 = vsub.f32 %v133, %v143
    %v146 = vsub.f32 %v134, %v144
    %v147 = vmul.f32 %v145, %v119
    %v148 = vmul.f32 %v146, %v120
    %s149 = sadd.s32 0, 0
    %s150 = sadd.s32 %s149, 1
    %s151 = smul.u32 %s150, 16
    %p152 = scmp.gt.s32.totalorder %s151, 16
    %p153 = scmp.le.s32.totalorder %s151, 16
    // Predicated region
    $region18: #{bce_loss.1} parent=1 // pred_check
      %p154 = pneg %p153
    $region19: #{bce_loss.1} parent=1 // pred_check_branch
      %156 = sbr.rel (%p154) target = $region21
    $region20: #{bce_loss.1} parent=1 // pred_region
      %v157 = vld [vmem:[#allocation2] sm:$0xff]
      %v158 = vadd.f32 %v147, %v148
      %v159 = vadd.f32 %v157, %v158
      %160 = vst [vmem:[#allocation2] sm:$0xff] %v159
      %v161 = vld [vmem:[#allocation3] sm:$0xff]
      %v162 = vadd.f32 %v119, %v120
      %v163 = vadd.f32 %v161, %v162
      %164 = vst [vmem:[#allocation3] sm:$0xff] %v163
    $region21: #{bce_loss.1} parent=1 // pred_fallthru
      _
    // Predicated region
    $region22: #{bce_loss.1} parent=1 // pred_check
      %p165 = pneg %p152
    $region23: #{bce_loss.1} parent=1 // pred_check_branch
      %167 = sbr.rel (%p165) target = $region25
    $region24: #{bce_loss.1} parent=1 // pred_region
      %s168 = smul.u32 %s149, 16
      %v169 = vlaneseq
      %v170 = vshrl.u32 %v169, 7
      %v171 = vadd.s32 %v170, 8
      %v172 = vstv %s168
      %v173 = vadd.s32 %v172, %v170
      %v174 = vadd.s32 %v172, %v171
      %vm175 = vcmp.lt.s32.totalorder %v173, 16
      %vm176 = vcmp.lt.s32.totalorder %v174, 16
      %v177 = vld [vmem:[#allocation2] sm:$0xff]
      %v178 = vsel %vm175, %v147, 0.0
      %v179 = vsel %vm176, %v148, 0.0
      %v180 = vadd.f32 %v178, %v179
      %v181 = vadd.f32 %v177, %v180
      %182 = vst [vmem:[#allocation2] sm:$0xff] %v181
      %v183 = vld [vmem:[#allocation3] sm:$0xff]
      %v184 = vsel %vm175, %v119, 0.0
      %v185 = vsel %vm176, %v120, 0.0
      %v186 = vadd.f32 %v184, %v185
      %v187 = vadd.f32 %v183, %v186
      %188 = vst [vmem:[#allocation3] sm:$0xff] %v187
    $region25: #{bce_loss.1} parent=1 // pred_fallthru
      _
    // Predicated region
    $region26: #{bce_loss.1} parent=1 // pred_check
      %p189 = pneg %p111
    $region27: #{bce_loss.1} parent=1 // pred_check_branch
      %191 = sbr.rel (%p189) target = $region29
    $region28: #{bce_loss.1} parent=1 // pred_region
      %v192 = vld [vmem:[#allocation2] sm:$0xff]
      %193 = vadd.xlane.f32.xlu0 %v192
      %v194 = vpop.xlane.xlu0 %193
      %v195 = vrot.slane %v194, 4
      %v196 = vadd.f32 %v194, %v195
      %v197 = vrot.slane %v196, 2
      %v198 = vadd.f32 %v196, %v197
      %v199 = vrot.slane %v198, 1
      %v200 = vadd.f32 %v198, %v199
      %s201 = vtos %v200
      %s202 = scalar_lea.smem [#allocation4], 0
      %203 = sst [smem:[%s202]] %s201
      %v204 = vld [vmem:[#allocation3] sm:$0xff]
      %205 = vadd.xlane.f32.xlu0 %v204
      %v206 = vpop.xlane.xlu0 %205
      %v207 = vrot.slane %v206, 4
      %v208 = vadd.f32 %v206, %v207
      %v209 = vrot.slane %v208, 2
      %v210 = vadd.f32 %v208, %v209
      %v211 = vrot.slane %v210, 1
      %v212 = vadd.f32 %v210, %v211
      %s213 = vtos %v212
      %s214 = scalar_lea.smem [#allocation4], 1
      %215 = sst [smem:[%s214]] %s213
    $region29: #{bce_loss.1} parent=1 // pred_fallthru
      _
    // Predicated region
    $region30: #{bce_loss.1} parent=1 // pred_check
      _
    $region31: #{bce_loss.1} parent=1 // pred_check_branch
      %217 = sbr.rel (0) target = $region33
    $region32: #{bce_loss.1} parent=1 // pred_region
      %s219 = ssub.s32 16, 16
      %220 = vsyncadd [#allocation5], %s219
      %s222 = sshll.u32 %s3, 4
      %s223 = int_to_ptr.vmem [resolvable:$true] %s222
      %225 = dma.smem_to_vmem [#allocation4], 16, %s223, [#allocation5]
    $region33: #{bce_loss.1} parent=1 // pred_fallthru
      _
    // Predicated region
    $region34: #{bce_loss.1} parent=1 // pred_check
      _
    $region35: #{bce_loss.1} parent=1 // pred_check_branch
      %227 = sbr.rel (0) target = $region37
    $region36: #{bce_loss.1} parent=1 // pred_region
      %228 = dma.done [#allocation5], 16
    $region37: #{bce_loss.1} parent=1 // pred_fallthru
      _
    %229 = sfence
    %230 = vsyncpa [#allocation5], 1

</llo_original>
